<compile_context>
chip_gen: v7x
topology: tpu7x:2x2x1
jax: 0.10.0
libtpu: 0.0.40
codegen_flags: <defaults>
</compile_context>

<pallas_src>
import functools

import jax
import jax.numpy as jnp
from jax.experimental import pallas as pl
from jax.experimental.pallas import tpu as pltpu


def _round_up(x, m):
    return (x + m - 1) // m * m


def _vmem_limit_bytes(block_bytes, headroom=4 << 20, ceiling=60 << 20):
    """Double-buffered block budget + headroom, clamped below physical VMEM."""
    need = 2 * sum(block_bytes) + headroom
    return int(min(max(need, 16 << 20), ceiling))


# --------------------------------------------------------------------------
# Kernel 1: NEPAM group score (manhattan distance of each group member to the
#           group's top-left member, averaged over members + channels;
#           fuses P1NormDist + avg_pool2d).
# --------------------------------------------------------------------------
def _score_kernel(x_ref, score_ref, *, inv_scale):
    # x_ref : (GP, TNG, Cp_pad)   score_ref : (TNG, 1)
    gp = x_ref.shape[0]
    ref0 = x_ref[0].astype(jnp.float32)                      # (TNG, Cp_pad)
    s = jnp.zeros((x_ref.shape[1], 1), jnp.float32)
    # GP is tiny (2 or 4); reduce each member immediately so we never hold /
    # re-store a full (TNG, Cp) accumulator (vst is the scarce slot).
    for m in range(1, gp):
        d = jnp.abs(x_ref[m].astype(jnp.float32) - ref0)
        s = s + jnp.sum(d, axis=-1, keepdims=True)
    score_ref[...] = s * inv_scale


def _pick_ng_tile(ng, gp, cp_pad, itemsize=4, target_bytes=2 << 20):
    """Largest multiple-of-8 divisor of NG whose input block fits the target."""
    if ng % 8 != 0:
        return ng                                # full-dim block (still legal)
    divs = [d for d in range(8, ng + 1, 8) if ng % d == 0]
    fits = [d for d in divs if gp * d * cp_pad * itemsize <= target_bytes]
    return max(fits) if fits else min(divs)


def group_scores(x_grp, cp_real):
    """x_grp: (B, GP, NG, Cp_pad) -> scores (B, NG) float32.

    Trailing Cp padding is zeros on every member, so it contributes 0 to the
    |diff| sum; the scale uses the real Cp.
    """
    B, GP, NG, Cp_pad = x_grp.shape
    itemsize = jnp.dtype(x_grp.dtype).itemsize
    tng = _pick_ng_tile(NG, GP, Cp_pad, itemsize)
    kernel = functools.partial(_score_kernel,
                               inv_scale=1.0 / float(GP * cp_real))
    blk_bytes = [GP * tng * Cp_pad * itemsize,     # input tile
                 tng * 128 * 4]                    # output tile (lane-padded)
    out = pl.pallas_call(
        kernel,
        out_shape=jax.ShapeDtypeStruct((B, NG, 1), jnp.float32),
        grid=(B, NG // tng),
        in_specs=[pl.BlockSpec((None, GP, tng, Cp_pad),
                               lambda b, t: (b, 0, t, 0))],
        out_specs=pl.BlockSpec((None, tng, 1), lambda b, t: (b, t, 0)),
        compiler_params=pltpu.CompilerParams(
            dimension_semantics=("parallel", "parallel"),
            vmem_limit_bytes=_vmem_limit_bytes(blk_bytes)),
    )(x_grp)
    return out[..., 0]


# --------------------------------------------------------------------------
# Kernel 2: patch projection of ALL tokens as one tiled matmul.
#   B is folded into M; the token selection becomes a cheap XLA gather on the
#   projected output, so the scalar-gather machinery that previously
#   serialized in front of the MXU is gone.
# --------------------------------------------------------------------------
def _proj_kernel(a_ref, w_ref, b_ref, o_ref):
    acc = jnp.dot(a_ref[...], w_ref[...], preferred_element_type=jnp.float32)
    o_ref[...] = (acc + b_ref[...]).astype(o_ref.dtype)


def project_all(x2d, w_pad, bias_pad, *, tm):
    """x2d (M_pad, Cp_pad) @ w_pad (Cp_pad, E_pad) + bias -> (M_pad, E_pad)."""
    M_pad, Cp_pad = x2d.shape
    E_pad = w_pad.shape[1]
    itemsize = jnp.dtype(x2d.dtype).itemsize
    blk_bytes = [tm * Cp_pad * itemsize,           # A tile
                 Cp_pad * E_pad * itemsize,        # resident weight
                 8 * E_pad * itemsize,             # bias (sublane-padded)
                 tm * E_pad * itemsize]            # out tile
    # TODO(synk): if E_pad ever gets >= ~2048, add an inner E-tile grid axis so
    # the resident weight block shrinks to (Cp_pad, TE).
    return pl.pallas_call(
        _proj_kernel,
        out_shape=jax.ShapeDtypeStruct((M_pad, E_pad), x2d.dtype),
        grid=(M_pad // tm,),
        in_specs=[
            pl.BlockSpec((tm, Cp_pad), lambda m: (m, 0)),
            # constant index maps -> fetched once, VMEM-resident across tiles
            pl.BlockSpec((Cp_pad, E_pad), lambda m: (0, 0)),
            pl.BlockSpec((1, E_pad), lambda m: (0, 0)),
        ],
        out_specs=pl.BlockSpec((tm, E_pad), lambda m: (m, 0)),
        compiler_params=pltpu.CompilerParams(
            dimension_semantics=("parallel",),
            vmem_limit_bytes=_vmem_limit_bytes(blk_bytes)),
    )(x2d, w_pad, bias_pad)


# --------------------------------------------------------------------------
# Glue (single rearrange, index tables, sort/gather index math)
# --------------------------------------------------------------------------
def make_token_idx2(fh, fw, g0, g1):
    """token_idx2[hp*g1+wp, h*gw+w] = flat token index of that group member."""
    gh, gw = fh // g0, fw // g1
    h = jnp.arange(gh)
    w = jnp.arange(gw)
    hp = jnp.arange(g0)
    wp = jnp.arange(g1)
    rows = h[:, None] * g0 + hp[None, :]                        # (gh, g0)
    cols = w[:, None] * g1 + wp[None, :]                        # (gw, g1)
    tok = rows[:, :, None, None] * fw + cols[None, None, :, :]  # (gh,g0,gw,g1)
    return jnp.transpose(tok, (1, 3, 0, 2)).reshape(g0 * g1, gh * gw)


def patch_embed_merge(x, proj_w, proj_b, *, patch_size, merge_group_size,
                      merge_group_num, token_pos=(0, 0)):
    B, C, H, W = x.shape
    P0, P1 = patch_size
    g0, g1 = merge_group_size
    fh, fw = H // P0, W // P1
    gh, gw = fh // g0, fw // g1
    Cp = C * P0 * P1
    Cp_pad = _round_up(Cp, 128)
    N = fh * fw
    NG, GP = gh * gw, g0 * g1
    E = proj_w.shape[0]
    E_pad = _round_up(E, 128)

    # single HBM rearrange: NCHW -> (B, GP, NG, Cp) + lane-dense Cp padding
    x_grp = x.reshape(B, C, gh, g0, P0, gw, g1, P1)
    x_grp = jnp.transpose(x_grp, (0, 3, 6, 2, 5, 1, 4, 7)).reshape(B, GP, NG, Cp)
    x_grp = jnp.pad(x_grp, ((0, 0), (0, 0), (0, 0), (0, Cp_pad - Cp)))

    # NEPAM group score (Pallas kernel 1)
    score = group_scores(x_grp, Cp)                               # (B, NG)

    # SortIndex / AlignTokenIdx / SelectToken index math
    # TODO(synk): stable argsort + index sort/concat have no clean Pallas
    # equivalent; they stay in plain JAX (tiny int tensors).
    token_idx2 = make_token_idx2(fh, fw, g0, g1)                  # (GP, NG)
    order = jnp.argsort(score, axis=1, stable=True)               # (B, NG)
    merge_groups = order[:, :merge_group_num]                     # (B, mgn)
    keep_groups = order[:, merge_group_num:]                      # (B, NK)
    keep_tok = jnp.take(token_idx2, keep_groups, axis=1)          # (GP, B, NK)
    keep_tok = jnp.transpose(keep_tok, (1, 0, 2)).reshape(B, -1)
    r = token_pos[1] * g0 + token_pos[0]
    merged_tok = jnp.take(token_idx2[r], merge_groups)            # (B, mgn)
    token_idx = jnp.sort(
        jnp.concatenate([merged_tok, keep_tok], axis=1), axis=1)  # (B, L)
    L = token_idx.shape[1]

    # map flat token index -> row index inside x_grp.reshape(B, N, Cp_pad)
    t = jnp.arange(N, dtype=jnp.int32)
    th, tw = t // fw, t % fw
    row_of_token = ((th % g0) * g1 + (tw % g1)) * NG \
        + (th // g0) * gw + (tw // g1)                            # (N,)
    rows = jnp.take(row_of_token, token_idx).astype(jnp.int32)    # (B, L)

    # project ALL N tokens: fold B into M, MXU-friendly M tile (>= 128)
    TM = 256 if B * N >= 256 else 128
    M = B * N
    M_pad = _round_up(M, TM)
    x2d = x_grp.reshape(M, Cp_pad)                                # free reshape
    if M_pad != M:
        x2d = jnp.pad(x2d, ((0, M_pad - M), (0, 0)))

    # TODO(synk): for bf16 model weights, cast x2d/w_pad to bf16 here to hit
    # the fast MXU path (kept f32 to preserve reference-check tolerances).
    w_t = jnp.transpose(proj_w.reshape(E, Cp))                    # (Cp, E)
    w_pad = jnp.zeros((Cp_pad, E_pad), w_t.dtype).at[:Cp, :E].set(w_t)
    b_pad = jnp.zeros((1, E_pad), proj_b.dtype).at[0, :E].set(proj_b)

    y_all = project_all(x2d, w_pad, b_pad, tm=TM)                 # (M_pad,E_pad)
    y_all = y_all[:M].reshape(B, N, E_pad)

    # gather the L kept tokens from the projected output (plain XLA gather;
    # L is ~85-90% of N, so projecting the merged-away rows is cheap)
    out = jnp.take_along_axis(y_all, rows[:, :, None], axis=1)[:, :, :E]
    return out, token_idx


# --------------------------------------------------------------------------
if __name__ == "__main__":
    key = jax.random.PRNGKey(0)
    B, C, H, W = 2, 3, 16, 16          # small NCHW input
    patch_size = (4, 4)
    merge_group_size = (1, 2)
    merge_group_num = 2
    embed_dim = 32

    k1, k2, k3 = jax.random.split(key, 3)
    x = jax.random.normal(k1, (B, C, H, W), jnp.float32)
    proj_w = 0.02 * jax.random.normal(
        k2, (embed_dim, C, patch_size[0], patch_size[1]), jnp.float32)
    proj_b = 0.02 * jax.random.normal(k3, (embed_dim,), jnp.float32)

    fwd = jax.jit(functools.partial(
        patch_embed_merge,
        patch_size=patch_size,
        merge_group_size=merge_group_size,
        merge_group_num=merge_group_num,
        token_pos=(0, 0)))

    out, idx = fwd(x, proj_w, proj_b)
    jax.block_until_ready((out, idx))

    # ---- lightweight pure-JAX reference checks ----
    P0, P1 = patch_size
    g0, g1 = merge_group_size
    fh, fw = H // P0, W // P1
    gh, gw = fh // g0, fw // g1
    Cp = C * P0 * P1
    Cp_pad = _round_up(Cp, 128)
    N = fh * fw
    NG, GP = gh * gw, g0 * g1

    # PyTorch-mirroring reference path: b c (h hp)(w wp) -> b (c hp wp) h w
    xr = x.reshape(B, C, fh, P0, fw, P1)
    xr = jnp.transpose(xr, (0, 1, 3, 5, 2, 4)).reshape(B, Cp, fh, fw)

    # score reference (SelectRef + P1NormDist + avg_pool2d)
    x_ref_up = jnp.repeat(jnp.repeat(xr[:, :, ::g0, ::g1], g0, axis=2),
                          g1, axis=3)
    dist = jnp.mean(jnp.abs(x_ref_up - xr), axis=1)               # (B, fh, fw)
    score_ref = dist.reshape(B, gh, g0, gw, g1).mean(axis=(2, 4)).reshape(B, NG)

    # score kernel check (same single-rearrange + Cp-padded layout as pipeline)
    xg_t = x.reshape(B, C, gh, g0, P0, gw, g1, P1)
    xg_t = jnp.transpose(xg_t, (0, 3, 6, 2, 5, 1, 4, 7)).reshape(B, GP, NG, Cp)
    xg_t = jnp.pad(xg_t, ((0, 0), (0, 0), (0, 0), (0, Cp_pad - Cp)))
    score_ker = group_scores(xg_t, Cp)
    assert jnp.allclose(score_ker, score_ref, atol=1e-5, rtol=1e-5)

    # projection + gather check (using token_idx produced by the pipeline)
    x_tok = jnp.transpose(xr.reshape(B, Cp, N), (0, 2, 1))
    x_sel_ref = jnp.take_along_axis(x_tok, idx[:, :, None], axis=1)
    out_ref = jnp.einsum('blc,ec->ble', x_sel_ref,
                         proj_w.reshape(embed_dim, Cp)) + proj_b
    assert jnp.allclose(out, out_ref, atol=1e-3, rtol=1e-3)

    L_expect = merge_group_num + GP * (NG - merge_group_num)
    assert out.shape == (B, L_expect, embed_dim)
    assert idx.shape == (B, L_expect)
    print("KERNEL_OK")
</pallas_src>

<mosaic_0001>
module attributes {stable_mosaic.version = 11 : i64} {
  func.func @_score_kernel(%arg0: i32, %arg1: i32, %arg2: memref<1x2x8x128xf32, #tpu.memory_space<vmem>>, %arg3: memref<1x8x1xf32, #tpu.memory_space<vmem>>) attributes {dimension_semantics = [#tpu.dimension_semantics<parallel>, #tpu.dimension_semantics<parallel>], iteration_bounds = array<i64: 2, 1>, scalar_prefetch = 0 : i64, scratch_operands = 0 : i64, tpu.core_type = #tpu.core_type<tc>, window_params = [{transform_indices = @transform_0, window_bounds = array<i64: 1, 2, 8, 128>}, {transform_indices = @transform_1, window_bounds = array<i64: 1, 8, 1>}]} {
    %c0 = arith.constant 0 : index
    %c0_0 = arith.constant 0 : index
    %c0_1 = arith.constant 0 : index
    %c0_2 = arith.constant 0 : index
    %0 = vector.load %arg2[%c0, %c0_0, %c0_1, %c0_2] : memref<1x2x8x128xf32, #tpu.memory_space<vmem>>, vector<1x1x8x128xf32>
    %1 = vector.shape_cast %0 : vector<1x1x8x128xf32> to vector<8x128xf32>
    %cst = arith.constant 0.000000e+00 : f32
    %2 = vector.broadcast %cst : f32 to vector<8x1xf32>
    %c0_3 = arith.constant 0 : index
    %c1 = arith.constant 1 : index
    %c0_4 = arith.constant 0 : index
    %c0_5 = arith.constant 0 : index
    %3 = vector.load %arg2[%c0_3, %c1, %c0_4, %c0_5] : memref<1x2x8x128xf32, #tpu.memory_space<vmem>>, vector<1x1x8x128xf32>
    %4 = vector.shape_cast %3 : vector<1x1x8x128xf32> to vector<8x128xf32>
    %5 = arith.subf %4, %1 : vector<8x128xf32>
    %6 = math.absf %5 : vector<8x128xf32>
    %cst_6 = arith.constant dense<0.000000e+00> : vector<8xf32>
    %7 = vector.multi_reduction <add>, %6, %cst_6 [1] : vector<8x128xf32> to vector<8xf32>
    %8 = vector.shape_cast %7 : vector<8xf32> to vector<8x1xf32>
    %9 = arith.addf %2, %8 : vector<8x1xf32>
    %cst_7 = arith.constant 0.010416667 : f32
    %10 = vector.broadcast %cst_7 : f32 to vector<8x1xf32>
    %11 = arith.mulf %9, %10 : vector<8x1xf32>
    %c0_8 = arith.constant 0 : index
    %c0_9 = arith.constant 0 : index
    %c0_10 = arith.constant 0 : index
    %12 = vector.load %arg3[%c0_8, %c0_9, %c0_10] : memref<1x8x1xf32, #tpu.memory_space<vmem>>, vector<1x8x1xf32>
    %13 = vector.shape_cast %12 : vector<1x8x1xf32> to vector<8x1xf32>
    %14 = vector.shape_cast %11 : vector<8x1xf32> to vector<1x8x1xf32>
    tpu.vector_store %arg3[%c0_8, %c0_9, %c0_10], %14 {strides = array<i32>} : memref<1x8x1xf32, #tpu.memory_space<vmem>>, vector<1x8x1xf32>,
    return
  }
  func.func @transform_0(%arg0: i32, %arg1: i32) -> (i32, i32, i32, i32) {
    %c0_i32 = arith.constant 0 : i32
    %c0_i32_0 = arith.constant 0 : i32
    %c0_i32_1 = arith.constant 0 : i32
    return %arg0, %c0_i32, %arg1, %c0_i32_0 : i32, i32, i32, i32
  }
  func.func @transform_1(%arg0: i32, %arg1: i32) -> (i32, i32, i32) {
    %c0_i32 = arith.constant 0 : i32
    %c0_i32_0 = arith.constant 0 : i32
    return %arg0, %arg1, %c0_i32 : i32, i32, i32
  }
}

module attributes {stable_mosaic.version = 11 : i64} {
  func.func @_proj_kernel(%arg0: i32, %arg1: memref<128x128xf32, #tpu.memory_space<vmem>>, %arg2: memref<128x128xf32, #tpu.memory_space<vmem>>, %arg3: memref<1x128xf32, #tpu.memory_space<vmem>>, %arg4: memref<128x128xf32, #tpu.memory_space<vmem>>) attributes {dimension_semantics = [#tpu.dimension_semantics<parallel>], iteration_bounds = array<i64: 1>, scalar_prefetch = 0 : i64, scratch_operands = 0 : i64, tpu.core_type = #tpu.core_type<tc>, window_params = [{transform_indices = @transform_0, window_bounds = array<i64: 128, 128>}, {pipeline_mode = #tpu.pipeline_mode<synchronous>, transform_indices = @transform_1, window_bounds = array<i64: 128, 128>}, {pipeline_mode = #tpu.pipeline_mode<synchronous>, transform_indices = @transform_2, window_bounds = array<i64: 1, 128>}, {transform_indices = @transform_3, window_bounds = array<i64: 128, 128>}]} {
    %c0 = arith.constant 0 : index
    %c0_0 = arith.constant 0 : index
    %0 = vector.load %arg1[%c0, %c0_0] : memref<128x128xf32, #tpu.memory_space<vmem>>, vector<128x128xf32>
    %c0_1 = arith.constant 0 : index
    %c0_2 = arith.constant 0 : index
    %1 = vector.load %arg2[%c0_1, %c0_2] : memref<128x128xf32, #tpu.memory_space<vmem>>, vector<128x128xf32>
    %cst = arith.constant dense<0.000000e+00> : vector<128x128xf32>
    %2 = tpu.matmul %0, %1, %cst {dimension_numbers = #tpu.dot_dimension_numbers<[1], [0], [0], [1], [0, 0, 1, 1], [], []>} : vector<128x128xf32>, vector<128x128xf32>, vector<128x128xf32> -> vector<128x128xf32>
    %c0_3 = arith.constant 0 : index
    %c0_4 = arith.constant 0 : index
    %3 = vector.load %arg3[%c0_3, %c0_4] : memref<1x128xf32, #tpu.memory_space<vmem>>, vector<1x128xf32>
    %4 = vector.broadcast %3 : vector<1x128xf32> to vector<128x128xf32>
    %5 = arith.addf %2, %4 : vector<128x128xf32>
    %c0_5 = arith.constant 0 : index
    %c0_6 = arith.constant 0 : index
    %6 = vector.load %arg4[%c0_5, %c0_6] : memref<128x128xf32, #tpu.memory_space<vmem>>, vector<128x128xf32>
    tpu.vector_store %arg4[%c0_5, %c0_6], %5 {strides = array<i32>} : memref<128x128xf32, #tpu.memory_space<vmem>>, vector<128x128xf32>,
    return
  }
  func.func @transform_0(%arg0: i32) -> (i32, i32) {
    %c0_i32 = arith.constant 0 : i32
    %c0_i32_0 = arith.constant 0 : i32
    return %arg0, %c0_i32 : i32, i32
  }
  func.func @transform_1(%arg0: i32) -> (i32, i32) {
    %c0_i32 = arith.constant 0 : i32
    %c0_i32_0 = arith.constant 0 : i32
    %c0_i32_1 = arith.constant 0 : i32
    return %c0_i32, %c0_i32_0 : i32, i32
  }
  func.func @transform_2(%arg0: i32) -> (i32, i32) {
    %c0_i32 = arith.constant 0 : i32
    %c0_i32_0 = arith.constant 0 : i32
    %c0_i32_1 = arith.constant 0 : i32
    return %c0_i32, %c0_i32_0 : i32, i32
  }
  func.func @transform_3(%arg0: i32) -> (i32, i32) {
    %c0_i32 = arith.constant 0 : i32
    %c0_i32_0 = arith.constant 0 : i32
    return %arg0, %c0_i32 : i32, i32
  }
}

</mosaic_0001>

<llo_original>
// kernel: squeeze.3
$region0: #{squeeze.3}
  %s0 = inlined_call_operand.vmem [shape: s32[1,1,4,2], index: 0, kind: input, shape index: {}]
  %s1 = inlined_call_operand.vmem [shape: s32[8], index: 1, kind: output, shape index: {}]
  $region1: #{squeeze.3} parent=0
    #allocation0 [shape = 'u8[4096]{0}', space=vmem, size = 0x1000, scoped, tag = 'scoped mem for output reshape']
    #allocation1 [shape = 'u8[4096]{0}', space=vmem, size = 0x1000, scoped, tag = 'scoped mem for input reshape']
    %s3 = sshllo.u32 0, 4
    %v4 = vld [vmem:[%s0] sm:%s3]
    %5 = vst [vmem:[#allocation1] sm:%s3] %v4
    %v6 = vld [vmem:[#allocation1] sm:$0x1]
    %vm7 = vcmask 15360
    %8 = vst.msk [vmem:[#allocation0] sm:$0x1] %vm7, %v6
    %s9 = scalar_lea.vmem [#allocation1], 3
    %v10 = vld [vmem:[%s9] sm:$0x1]
    %11 = vrot.lane.b32.xlu0 %v10, 6
    %v12 = vpop.permute.xlu0 %11
    %vm13 = vcmask 64560
    %14 = vst.msk [vmem:[#allocation0] sm:$0x1] %vm13, %v12
    %s15 = scalar_lea.vmem [#allocation1], 2
    %v16 = vld [vmem:[%s15] sm:$0x1]
    %17 = vrot.lane.b32.xlu0 %v16, 4
    %v18 = vpop.permute.xlu0 %17
    %vm19 = vcmask 48160
    %20 = vst.msk [vmem:[#allocation0] sm:$0x1] %vm19, %v18
    %s21 = scalar_lea.vmem [#allocation1], 1
    %v22 = vld [vmem:[%s21] sm:$0x1]
    %23 = vrot.lane.b32.xlu0 %v22, 2
    %v24 = vpop.permute.xlu0 %23
    %vm25 = vcmask 31760
    %26 = vst.msk [vmem:[#allocation0] sm:$0x1] %vm25, %v24
    %s28 = sshllo.u32 0, 1
    %v30 = vld [vmem:[#allocation0] sm:%s28]
    %s31 = sshllo.u32 0, 1
    %32 = vst [vmem:[%s1] sm:%s31] %v30

// kernel: patch_embed_merge.2
$region0: #{patch_embed_merge.2}
  #allocation0 [shape = 'u32[]', space=smem, size = 0x4, offset = 0x4, fixed_abs, tag = 'smem constant byte address 0x4 - core index']
  #allocation1 [shape = 'u32[144,128]{1,0:T(1,128)}', space=vmem, size = 0x12000, scoped, tag = 'internal scratch']
  %s0 = inlined_call_operand.vmem [shape: f32[2,2,8,128], index: 0, kind: input, shape index: {}]
  %s1 = inlined_call_operand.vmem [shape: f32[2,8,1], index: 1, kind: output, shape index: {}]
  %s2 = sld [smem:[#allocation0]]
  $region37: #{patch_embed_merge.2} parent=0
    _
  %s4 = ssub.s32 1, %s2
  %s5 = scalar_select 0, %s4, %s2
  loop: start=0, step=1, limit=4
  $region2: #{patch_embed_merge.2} parent=0 // loop_pre_header
    _
  $region3: #{patch_embed_merge.2} parent=0 // loop_header
    %s7 = sphi 0, %s11
    %p8 = scmp.ge.s32.totalorder %s7, 4
    %s14 = sphi 0, %s26
    %s15 = sphi 0, %s22
    %s16 = sphi 0, %s14
    %s17 = sphi 0, %s15
    %s18 = sphi 0, %s16
    %s19 = sphi 0, %s17
    %s31 = sphi 0, %s33
    %s34 = sphi 0, %s31
    %s35 = sphi 0, %s34
    %s51 = sphi 0, %s35
    %s59 = sphi 0, %s61
    %s62 = sphi 0, %s59
    %s63 = sphi 0, %s62
    %s79 = sphi 0, %s63
  $region4: #{patch_embed_merge.2} parent=0 // loop_header_branch
    %10 = sbr.rel (%p8) target = $region8
  $region5: #{patch_embed_merge.2} parent=0 // loop_body
    %s12 = ssub.s32 %s7, 1
    %s13 = ssub.s32 %s7, 2
    %s20 = sadd.s32 1, %s15
    %p21 = scmp.ge.s32.totalorder %s20, 1
    %s22 = scalar_select %p21, 0, %s20
    %s23 = sadd.s32 1, %s14
    %s24 = scalar_select %p21, %s23, %s14
    %p25 = scmp.ge.s32.totalorder %s24, 2
    %s26 = scalar_select %p25, 0, %s24
    %s27 = ssub.s32 %s14, %s26
    %s28 = ssub.s32 %s15, %s22
    %s29 = sor.u32 %s27, %s28
    %p30 = scmp.eq.s32.totalorder %s29, 0
    %s32 = sadd.s32 %s31, 1
    %s33 = scalar_select %p30, %s31, %s32
    %p36 = pneg %p30
    %p37 = scmp.eq.s32.totalorder %s7, 1
    %p38 = por %p36, %p37
    %p39 = scmp.ne.s32.totalorder %s31, %s34
    %p40 = scmp.eq.s32.totalorder %s7, 0
    %p41 = por %p39, %p40
    %p42 = scmp.ne.s32.totalorder %s31, %s34
    %p43 = scmp.eq.s32.totalorder %s12, 1
    %p44 = por %p42, %p43
    %p45 = scmp.ne.s32.totalorder %s34, %s35
    %p46 = scmp.eq.s32.totalorder %s12, 0
    %p47 = por %p45, %p46
    %p48 = scmp.ne.s32.totalorder %s34, %s35
    %p49 = scmp.eq.s32.totalorder %s13, 1
    %p50 = por %p48, %p49
    %p52 = scmp.ne.s32.totalorder %s35, %s51
    %p53 = scmp.eq.s32.totalorder %s13, 0
    %p54 = por %p52, %p53
    %s55 = ssub.s32 %s14, %s26
    %s56 = ssub.s32 %s15, %s22
    %s57 = sor.u32 %s55, %s56
    %p58 = scmp.eq.s32.totalorder %s57, 0
    %s60 = sadd.s32 %s59, 1
    %s61 = scalar_select %p58, %s59, %s60
    %p64 = pneg %p58
    %p65 = scmp.eq.s32.totalorder %s7, 1
    %p66 = por %p64, %p65
    %p67 = scmp.ne.s32.totalorder %s59, %s62
    %p68 = scmp.eq.s32.totalorder %s7, 0
    %p69 = por %p67, %p68
    %p70 = scmp.ne.s32.totalorder %s59, %s62
    %p71 = scmp.eq.s32.totalorder %s12, 1
    %p72 = por %p70, %p71
    %p73 = scmp.ne.s32.totalorder %s62, %s63
    %p74 = scmp.eq.s32.totalorder %s12, 0
    %p75 = por %p73, %p74
    %p76 = scmp.ne.s32.totalorder %s62, %s63
    %p77 = scmp.eq.s32.totalorder %s13, 1
    %p78 = por %p76, %p77
    %p80 = scmp.ne.s32.totalorder %s63, %s79
    %p81 = scmp.eq.s32.totalorder %s13, 0
    %p82 = por %p80, %p81
    %p83 = scmp.le.s32.totalorder 1, %s7
    %p84 = scmp.lt.s32.totalorder %s7, 3
    %p85 = pnand %p83, %p84
    %p86 = pneg %p85
    // Predicated region
    $region9: #{patch_embed_merge.2} parent=5 // pred_check
      _
    $region10: #{patch_embed_merge.2} parent=5 // pred_check_branch
      %88 = sbr.rel (%p85) target = $region12
    $region11: #{patch_embed_merge.2} parent=5 // pred_region
      %s89 = ssub.s32 %s7, 1
    $region12: #{patch_embed_merge.2} parent=5 // pred_fallthru
      _
    %p90 = scmp.lt.s32.totalorder %s7, 2
    // Predicated region
    $region13: #{patch_embed_merge.2} parent=5 // pred_check
      %p91 = pneg %p90
    $region14: #{patch_embed_merge.2} parent=5 // pred_check_branch
      %93 = sbr.rel (%p91) target = $region16
    $region15: #{patch_embed_merge.2} parent=5 // pred_region
      // Predicated region
      $region17: #{patch_embed_merge.2} parent=15 // pred_check
        %p94 = pneg %p41
      $region18: #{patch_embed_merge.2} parent=15 // pred_check_branch
        %96 = sbr.rel (%p94) target = $region20
      $region19: #{patch_embed_merge.2} parent=15 // pred_region
        %p97 = scmp.lt.s32.totalorder %s14, 1
        %s98 = scalar_select %p97, %s14, 1
        %p99 = scmp.lt.s32.totalorder %s15, 0
        %s100 = scalar_select %p99, %s15, 0
        %s101 = smul.addr %s98, 2
        %s102 = sadd.s32 %s100, %s101
        %s103 = smul.addr %s102, 8
        %s104 = scalar_lea.vmem %s0, %s103
      $region20: #{patch_embed_merge.2} parent=15 // pred_fallthru
        _
    $region16: #{patch_embed_merge.2} parent=5 // pred_fallthru
      _
    %p105 = scmp.le.s32.totalorder 1, %s7
    %p106 = scmp.lt.s32.totalorder %s7, 3
    %p107 = pnand %p105, %p106
    %p108 = pneg %p107
    // Predicated region
    $region21: #{patch_embed_merge.2} parent=5 // pred_check
      _
    $region22: #{patch_embed_merge.2} parent=5 // pred_check_branch
      %110 = sbr.rel (%p107) target = $region24
    $region23: #{patch_embed_merge.2} parent=5 // pred_region
      %s111 = ssub.s32 %s7, 1
      %p112 = scmp.lt.s32.totalorder %s16, 1
      %s113 = scalar_select %p112, %s16, 1
      %p114 = scmp.lt.s32.totalorder %s17, 0
      %s115 = scalar_select %p114, %s17, 0
      %s116 = smul.addr %s113, 2
      %s117 = sadd.s32 %s115, %s116
      %s118 = smul.addr %s117, 8
      %s119 = scalar_lea.vmem %s0, %s118
      %p120 = pneg %p47
      %p121 = pneg %p44
      %p122 = pneg %p75
      %p123 = pneg %p72
      %p124 = scmp.lt.s32.totalorder %s16, 1
      %s125 = scalar_select %p124, %s16, 1
      %p126 = scmp.lt.s32.totalorder %s17, 0
      %s127 = scalar_select %p126, %s17, 0
      %s128 = sadd.s32 %s127, %s125
      %s129 = smul.addr %s128, 8
      %s130 = scalar_lea.vmem %s1, %s129
      %p131 = scmp.lt.s32.totalorder %s16, 1
      %s132 = scalar_select %p131, %s16, 1
      %p133 = scmp.lt.s32.totalorder %s17, 0
      %s134 = scalar_select %p133, %s17, 0
      %s135 = smul.addr %s132, 2
      %s136 = sadd.s32 %s134, %s135
      %s137 = smul.addr %s136, 8
      %s138 = scalar_lea.vmem %s0, %s137
      %p139 = scmp.lt.s32.totalorder %s16, 1
      %s140 = scalar_select %p139, %s16, 1
      %p141 = scmp.lt.s32.totalorder %s17, 0
      %s142 = scalar_select %p141, %s17, 0
      %s143 = sadd.s32 %s142, %s140
      %s144 = smul.addr %s143, 8
      %s145 = scalar_lea.vmem %s1, %s144
      %v146 = vld [vmem:[%s138] sm:$0xff]
      %s147 = scalar_lea.vmem %s138, 8
      %v148 = vld [vmem:[%s147] sm:$0xff]
      %v149 = vsub.f32 %v148, %v146
      %v150 = vand.u32 2147483647, %v149
      %151 = vadd.xlane.f32.xlu0 %v150
      %v152 = vpop.xlane.xlu0 %151
      %v153 = vadd.f32 %v152, 0.0
      %v154 = vmul.f32 %v153, 0.010416667
      %vm155 = vcmask 7168
      %156 = vst.msk [vmem:[%s145] sm:$0xff] %vm155, %v154
      %p157 = scmp.lt.s32.totalorder %s16, 1
      %s158 = scalar_select %p157, %s16, 1
      %p159 = scmp.lt.s32.totalorder %s17, 0
      %s160 = scalar_select %p159, %s17, 0
      %s161 = sadd.s32 %s160, %s158
      %s162 = smul.addr %s161, 8
      %s163 = scalar_lea.vmem %s1, %s162
      // Predicated region
      $region25: #{patch_embed_merge.2} parent=23 // pred_check
        %p164 = pneg %p72
      $region26: #{patch_embed_merge.2} parent=23 // pred_check_branch
        %166 = sbr.rel (%p164) target = $region28
      $region27: #{patch_embed_merge.2} parent=23 // pred_region
        _
      $region28: #{patch_embed_merge.2} parent=23 // pred_fallthru
        _
    $region24: #{patch_embed_merge.2} parent=5 // pred_fallthru
      _
    %p167 = scmp.le.s32.totalorder 2, %s7
    // Predicated region
    $region29: #{patch_embed_merge.2} parent=5 // pred_check
      %p168 = pneg %p167
    $region30: #{patch_embed_merge.2} parent=5 // pred_check_branch
      %170 = sbr.rel (%p168) target = $region32
    $region31: #{patch_embed_merge.2} parent=5 // pred_region
      %s171 = ssub.s32 %s7, 2
      // Predicated region
      $region33: #{patch_embed_merge.2} parent=31 // pred_check
        %p172 = pneg %p78
      $region34: #{patch_embed_merge.2} parent=31 // pred_check_branch
        %174 = sbr.rel (%p172) target = $region36
      $region35: #{patch_embed_merge.2} parent=31 // pred_region
        %p175 = scmp.lt.s32.totalorder %s18, 1
        %s176 = scalar_select %p175, %s18, 1
        %p177 = scmp.lt.s32.totalorder %s19, 0
        %s178 = scalar_select %p177, %s19, 0
        %s179 = sadd.s32 %s178, %s176
        %s180 = smul.addr %s179, 8
        %s181 = scalar_lea.vmem %s1, %s180
      $region36: #{patch_embed_merge.2} parent=31 // pred_fallthru
        _
    $region32: #{patch_embed_merge.2} parent=5 // pred_fallthru
      _
  $region6: #{patch_embed_merge.2} parent=0 // loop_footer
    %s11 = sadd.s32 1, %s7
  $region7: #{patch_embed_merge.2} parent=0 // loop_footer_branch
    %6 = sbr.rel target = $region3
  $region8: #{patch_embed_merge.2} parent=0 // loop_exit
    _

// kernel: patch_embed_merge.3
$region0: #{patch_embed_merge.3}
  #allocation0 [shape = 'u32[]', space=smem, size = 0x4, offset = 0x4, fixed_abs, tag = 'smem constant byte address 0x4 - core index']
  #allocation1 [shape = 'u32[144,128]{1,0:T(1,128)}', space=vmem, size = 0x12000, scoped, tag = 'internal scratch']
  %s0 = inlined_call_operand.vmem [shape: f32[128,128], index: 0, kind: input, shape index: {}]
  %s1 = inlined_call_operand.vmem [shape: f32[128,128], index: 1, kind: input, shape index: {}]
  %s2 = inlined_call_operand.vmem [shape: f32[1,128], index: 2, kind: input, shape index: {}]
  %s3 = inlined_call_operand.vmem [shape: f32[128,128], index: 3, kind: output, shape index: {}]
  %s4 = sld [smem:[#allocation0]]
  $region22: #{patch_embed_merge.3} parent=0
    _
  %s6 = ssub.s32 1, %s4
  %s7 = scalar_select 0, %s6, %s4
  // Predicated region
  $region2: #{patch_embed_merge.3} parent=0 // pred_check
    _
  $region3: #{patch_embed_merge.3} parent=0 // pred_check_branch
    %9 = sbr.rel (0) target = $region5
  $region4: #{patch_embed_merge.3} parent=0 // pred_region
    _
  $region5: #{patch_embed_merge.3} parent=0 // pred_fallthru
    _
  // Predicated region
  $region6: #{patch_embed_merge.3} parent=0 // pred_check
    _
  $region7: #{patch_embed_merge.3} parent=0 // pred_check_branch
    %11 = sbr.rel (0) target = $region9
  $region8: #{patch_embed_merge.3} parent=0 // pred_region
    _
  $region9: #{patch_embed_merge.3} parent=0 // pred_fallthru
    _
  // Predicated region
  $region10: #{patch_embed_merge.3} parent=0 // pred_check
    _
  $region11: #{patch_embed_merge.3} parent=0 // pred_check_branch
    %13 = sbr.rel (0) target = $region13
  $region12: #{patch_embed_merge.3} parent=0 // pred_region
    _
  $region13: #{patch_embed_merge.3} parent=0 // pred_fallthru
    _
  %v14 = vld [vmem:[%s0] sm:$0xff]
  %v15 = vld [vmem:[%s0 + $0x8] sm:$0xff]
  %v16 = vld [vmem:[%s0 + $0x10] sm:$0xff]
  %v17 = vld [vmem:[%s0 + $0x18] sm:$0xff]
  %v18 = vld [vmem:[%s0 + $0x20] sm:$0xff]
  %v19 = vld [vmem:[%s0 + $0x28] sm:$0xff]
  %v20 = vld [vmem:[%s0 + $0x30] sm:$0xff]
  %v21 = vld [vmem:[%s0 + $0x38] sm:$0xff]
  %v22 = vld [vmem:[%s0 + $0x40] sm:$0xff]
  %v23 = vld [vmem:[%s0 + $0x48] sm:$0xff]
  %v24 = vld [vmem:[%s0 + $0x50] sm:$0xff]
  %v25 = vld [vmem:[%s0 + $0x58] sm:$0xff]
  %v26 = vld [vmem:[%s0 + $0x60] sm:$0xff]
  %v27 = vld [vmem:[%s0 + $0x68] sm:$0xff]
  %v28 = vld [vmem:[%s0 + $0x70] sm:$0xff]
  %v29 = vld [vmem:[%s0 + $0x78] sm:$0xff]
  %v30 = vld [vmem:[%s1] sm:$0xff]
  %v31 = vld [vmem:[%s1 + $0x8] sm:$0xff]
  %v32 = vld [vmem:[%s1 + $0x10] sm:$0xff]
  %v33 = vld [vmem:[%s1 + $0x18] sm:$0xff]
  %v34 = vld [vmem:[%s1 + $0x20] sm:$0xff]
  %v35 = vld [vmem:[%s1 + $0x28] sm:$0xff]
  %v36 = vld [vmem:[%s1 + $0x30] sm:$0xff]
  %v37 = vld [vmem:[%s1 + $0x38] sm:$0xff]
  %v38 = vld [vmem:[%s1 + $0x40] sm:$0xff]
  %v39 = vld [vmem:[%s1 + $0x48] sm:$0xff]
  %v40 = vld [vmem:[%s1 + $0x50] sm:$0xff]
  %v41 = vld [vmem:[%s1 + $0x58] sm:$0xff]
  %v42 = vld [vmem:[%s1 + $0x60] sm:$0xff]
  %v43 = vld [vmem:[%s1 + $0x68] sm:$0xff]
  %v44 = vld [vmem:[%s1 + $0x70] sm:$0xff]
  %v45 = vld [vmem:[%s1 + $0x78] sm:$0xff]
  %v46 = vld [vmem:[%s2] sm:$0x1]
  %v48 = vlaneseq
  %v49 = vshrl.u32 %v48, 7
  %v50 = vsub.s32 0, %v49
  %v51 = vrot.slane %v46, %v50
  %53 = vmatprep.subr.mxu0 0.0
  %54 = vmatpush1.msra.mxu0 %v30
  %55 = vmatprep.subr.mxu0 0.0
  %56 = vmatpush1.msra.mxu0 %v31
  %57 = vmatprep.subr.mxu0 0.0
  %58 = vmatpush1.msra.mxu0 %v32
  %59 = vmatprep.subr.mxu0 0.0
  %60 = vmatpush1.msra.mxu0 %v33
  %61 = vmatprep.subr.mxu0 0.0
  %62 = vmatpush1.msra.mxu0 %v34
  %63 = vmatprep.subr.mxu0 0.0
  %64 = vmatpush1.msra.mxu0 %v35
  %65 = vmatprep.subr.mxu0 0.0
  %66 = vmatpush1.msra.mxu0 %v36
  %67 = vmatprep.subr.mxu0 0.0
  %68 = vmatpush1.msra.mxu0 %v37
  %69 = vmatprep.subr.mxu0 0.0
  %70 = vmatpush1.msra.mxu0 %v38
  %71 = vmatprep.subr.mxu0 0.0
  %72 = vmatpush1.msra.mxu0 %v39
  %73 = vmatprep.subr.mxu0 0.0
  %74 = vmatpush1.msra.mxu0 %v40
  %75 = vmatprep.subr.mxu0 0.0
  %76 = vmatpush1.msra.mxu0 %v41
  %77 = vmatprep.subr.mxu0 0.0
  %78 = vmatpush1.msra.mxu0 %v42
  %79 = vmatprep.subr.mxu0 0.0
  %80 = vmatpush1.msra.mxu0 %v43
  %81 = vmatprep.subr.mxu0 0.0
  %82 = vmatpush1.msra.mxu0 %v44
  %83 = vmatprep.subr.mxu0 0.0
  %84 = vmatpush1.msra.mxu0 %v45
  %85 = vmatprep.subr.mxu0 0.0
  %86 = vmatpush1.msra.mxu0 0.0
  %87 = vmatprep.subr.mxu0 0.0
  %88 = vmatpush1.msra.mxu0 0.0
  %89 = vmatprep.subr.mxu0 0.0
  %90 = vmatpush1.msra.mxu0 0.0
  %91 = vmatprep.subr.mxu0 0.0
  %92 = vmatpush1.msra.mxu0 0.0
  %93 = vmatprep.subr.mxu0 0.0
  %94 = vmatpush1.msra.mxu0 0.0
  %95 = vmatprep.subr.mxu0 0.0
  %96 = vmatpush1.msra.mxu0 0.0
  %97 = vmatprep.subr.mxu0 0.0
  %98 = vmatpush1.msra.mxu0 0.0
  %99 = vmatprep.subr.mxu0 0.0
  %100 = vmatpush1.msra.mxu0 0.0
  %101 = vmatprep.subr.mxu0 0.0
  %102 = vmatpush1.msra.mxu0 0.0
  %103 = vmatprep.subr.mxu0 0.0
  %104 = vmatpush1.msra.mxu0 0.0
  %105 = vmatprep.subr.mxu0 0.0
  %106 = vmatpush1.msra.mxu0 0.0
  %107 = vmatprep.subr.mxu0 0.0
  %108 = vmatpush1.msra.mxu0 0.0
  %109 = vmatprep.subr.mxu0 0.0
  %110 = vmatpush1.msra.mxu0 0.0
  %111 = vmatprep.subr.mxu0 0.0
  %112 = vmatpush1.msra.mxu0 0.0
  %113 = vmatprep.subr.mxu0 0.0
  %114 = vmatpush1.msra.mxu0 0.0
  %115 = vmatprep.subr.mxu0 0.0
  %116 = vmatpush1.msra.mxu0 0.0
  %117 = vmatprep.mubr.f32.mxu0 0.0
  %118 = vmatmul.mubr.f32.gmra.mrb[0].mxu0 %v14
  %v119 = vpop.f32.mrb[0].mxu0
  %v120 = vadd.f32 %v51, %v119
  %v121 = vpop.f32.mrb[0].mxu0
  %122 = vmatprep.mubr.f32.mxu0 0.0
  %123 = vmatmul.mubr.f32.gmra.mrb[0].mxu0 %v15
  %v124 = vpop.f32.mrb[0].mxu0
  %v125 = vadd.f32 %v51, %v124
  %v126 = vpop.f32.mrb[0].mxu0
  %127 = vmatprep.mubr.f32.mxu0 0.0
  %128 = vmatmul.mubr.f32.gmra.mrb[0].mxu0 %v16
  %v129 = vpop.f32.mrb[0].mxu0
  %v130 = vadd.f32 %v51, %v129
  %v131 = vpop.f32.mrb[0].mxu0
  %132 = vmatprep.mubr.f32.mxu0 0.0
  %133 = vmatmul.mubr.f32.gmra.mrb[0].mxu0 %v17
  %v134 = vpop.f32.mrb[0].mxu0
  %v135 = vadd.f32 %v51, %v134
  %v136 = vpop.f32.mrb[0].mxu0
  %137 = vmatprep.mubr.f32.mxu0 0.0
  %138 = vmatmul.mubr.f32.gmra.mrb[0].mxu0 %v18
  %v139 = vpop.f32.mrb[0].mxu0
  %v140 = vadd.f32 %v51, %v139
  %v141 = vpop.f32.mrb[0].mxu0
  %142 = vmatprep.mubr.f32.mxu0 0.0
  %143 = vmatmul.mubr.f32.gmra.mrb[0].mxu0 %v19
  %v144 = vpop.f32.mrb[0].mxu0
  %v145 = vadd.f32 %v51, %v144
  %v146 = vpop.f32.mrb[0].mxu0
  %147 = vmatprep.mubr.f32.mxu0 0.0
  %148 = vmatmul.mubr.f32.gmra.mrb[0].mxu0 %v20
  %v149 = vpop.f32.mrb[0].mxu0
  %v150 = vadd.f32 %v51, %v149
  %v151 = vpop.f32.mrb[0].mxu0
  %152 = vmatprep.mubr.f32.mxu0 0.0
  %153 = vmatmul.mubr.f32.gmra.mrb[0].mxu0 %v21
  %v154 = vpop.f32.mrb[0].mxu0
  %v155 = vadd.f32 %v51, %v154
  %v156 = vpop.f32.mrb[0].mxu0
  %157 = vmatprep.mubr.f32.mxu0 0.0
  %158 = vmatmul.mubr.f32.gmra.mrb[0].mxu0 %v22
  %v159 = vpop.f32.mrb[0].mxu0
  %v160 = vadd.f32 %v51, %v159
  %v161 = vpop.f32.mrb[0].mxu0
  %162 = vmatprep.mubr.f32.mxu0 0.0
  %163 = vmatmul.mubr.f32.gmra.mrb[0].mxu0 %v23
  %v164 = vpop.f32.mrb[0].mxu0
  %v165 = vadd.f32 %v51, %v164
  %v166 = vpop.f32.mrb[0].mxu0
  %167 = vmatprep.mubr.f32.mxu0 0.0
  %168 = vmatmul.mubr.f32.gmra.mrb[0].mxu0 %v24
  %v169 = vpop.f32.mrb[0].mxu0
  %v170 = vadd.f32 %v51, %v169
  %v171 = vpop.f32.mrb[0].mxu0
  %172 = vmatprep.mubr.f32.mxu0 0.0
  %173 = vmatmul.mubr.f32.gmra.mrb[0].mxu0 %v25
  %v174 = vpop.f32.mrb[0].mxu0
  %v175 = vadd.f32 %v51, %v174
  %v176 = vpop.f32.mrb[0].mxu0
  %177 = vmatprep.mubr.f32.mxu0 0.0
  %178 = vmatmul.mubr.f32.gmra.mrb[0].mxu0 %v26
  %v179 = vpop.f32.mrb[0].mxu0
  %v180 = vadd.f32 %v51, %v179
  %v181 = vpop.f32.mrb[0].mxu0
  %182 = vmatprep.mubr.f32.mxu0 0.0
  %183 = vmatmul.mubr.f32.gmra.mrb[0].mxu0 %v27
  %v184 = vpop.f32.mrb[0].mxu0
  %v185 = vadd.f32 %v51, %v184
  %v186 = vpop.f32.mrb[0].mxu0
  %187 = vmatprep.mubr.f32.mxu0 0.0
  %188 = vmatmul.mubr.f32.gmra.mrb[0].mxu0 %v28
  %v189 = vpop.f32.mrb[0].mxu0
  %v190 = vadd.f32 %v51, %v189
  %v191 = vpop.f32.mrb[0].mxu0
  %192 = vmatprep.mubr.f32.mxu0 0.0
  %193 = vmatmul.mubr.f32.gmra.mrb[0].mxu0 %v29
  %v194 = vpop.f32.mrb[0].mxu0
  %v195 = vadd.f32 %v51, %v194
  %v196 = vpop.f32.mrb[0].mxu0
  %197 = vdwg.mxu0
  %198 = vst [vmem:[%s3] sm:$0xff] %v120
  %199 = vst [vmem:[%s3 + $0x8] sm:$0xff] %v125
  %200 = vst [vmem:[%s3 + $0x10] sm:$0xff] %v130
  %201 = vst [vmem:[%s3 + $0x18] sm:$0xff] %v135
  %202 = vst [vmem:[%s3 + $0x20] sm:$0xff] %v140
  %203 = vst [vmem:[%s3 + $0x28] sm:$0xff] %v145
  %204 = vst [vmem:[%s3 + $0x30] sm:$0xff] %v150
  %205 = vst [vmem:[%s3 + $0x38] sm:$0xff] %v155
  %206 = vst [vmem:[%s3 + $0x40] sm:$0xff] %v160
  %207 = vst [vmem:[%s3 + $0x48] sm:$0xff] %v165
  %208 = vst [vmem:[%s3 + $0x50] sm:$0xff] %v170
  %209 = vst [vmem:[%s3 + $0x58] sm:$0xff] %v175
  %210 = vst [vmem:[%s3 + $0x60] sm:$0xff] %v180
  %211 = vst [vmem:[%s3 + $0x68] sm:$0xff] %v185
  %212 = vst [vmem:[%s3 + $0x70] sm:$0xff] %v190
  %213 = vst [vmem:[%s3 + $0x78] sm:$0xff] %v195
  // Predicated region
  $region14: #{patch_embed_merge.3} parent=0 // pred_check
    _
  $region15: #{patch_embed_merge.3} parent=0 // pred_check_branch
    %215 = sbr.rel (0) target = $region17
  $region16: #{patch_embed_merge.3} parent=0 // pred_region
    _
  $region17: #{patch_embed_merge.3} parent=0 // pred_fallthru
    _
  // Predicated region
  $region18: #{patch_embed_merge.3} parent=0 // pred_check
    _
  $region19: #{patch_embed_merge.3} parent=0 // pred_check_branch
    %217 = sbr.rel (0) target = $region21
  $region20: #{patch_embed_merge.3} parent=0 // pred_region
    _
  $region21: #{patch_embed_merge.3} parent=0 // pred_fallthru
    _

</llo_original>
